<compile_context>
chip_gen: v5e
topology: v5e:2x2
jax: 0.10.0
libtpu: 0.0.40
codegen_flags: <defaults>
</compile_context>

<pallas_src>
import jax
import jax.numpy as jnp
from jax.experimental import pallas as pl
from jax.experimental.pallas import tpu as pltpu


def _mlp_kernel(x_ref, w12_ref, b12_ref, w3_ref, b3_ref, o_ref):
    # Fused Linear(in,8)+Linear(8,16) (no nonlinearity between them in the
    # original module): a single MXU matmul against W12.
    x = x_ref[...]
    h = jnp.dot(x, w12_ref[...], preferred_element_type=jnp.float32) + b12_ref[...]
    h = jnp.maximum(h, 0.0)                                      # ReLU
    z = jnp.dot(h, w3_ref[...], preferred_element_type=jnp.float32) + b3_ref[...]
    # Exact sigmoid: kernel is HBM-bound, the VPU/EUP have huge slack, so the
    # exact divide costs nothing and bit-matches jax.nn.sigmoid to ~1 ulp.
    o_ref[...] = (1.0 / (1.0 + jnp.exp(-z))).astype(o_ref.dtype)


def _round_up(n, m):
    return ((n + m - 1) // m) * m


def fuse_params(params):
    """Fold Linear(in,8) + Linear(8,16) into a single matmul.

    (x @ W1 + b1) @ W2 + b2 == x @ (W1 @ W2) + (b1 @ W2 + b2)   (exact math,
    f32 rounding order changes).  Call ONCE and reuse across forward calls so
    the tiny fusion matmuls are not re-dispatched every step.
    """
    w12 = (params["w1"] @ params["w2"]).astype(jnp.float32)      # (in, 16)
    b12 = (params["b1"] @ params["w2"] + params["b2"]).astype(jnp.float32)  # (1, 16)
    return {
        "w12": w12,
        "b12": b12,
        "w3": params["w3"].astype(jnp.float32),
        "b3": params["b3"].astype(jnp.float32),
    }


def simple_model_forward(x, fused, *, x_buffer_bytes=8 * 1024 * 1024):
    """x: (batch, ...) -> flattened like nn.Flatten().  fused: output of fuse_params."""
    batch = x.shape[0]
    x2d = x.reshape(batch, -1)                                   # nn.Flatten(), free
    if x2d.dtype != jnp.float32:
        # NOTE: if the upstream producer can emit bf16, stream bf16 and upcast
        # in-kernel instead (halves HBM traffic); a wrapper-side cast would add
        # its own full HBM pass, so we only convert when dtype actually differs.
        x2d = x2d.astype(jnp.float32)
    input_size = x2d.shape[1]

    w12, b12 = fused["w12"], fused["b12"]
    w3, b3 = fused["w3"], fused["b3"]
    n_classes = w3.shape[1]
    assert w12.shape[0] == input_size, "params do not match flattened input size"
    # TODO(synk): for very large input_size (>~16K flattened features) the full
    # W12 no longer fits VMEM; add a K-reduction grid axis ("arbitrary",
    # accumulate in a VMEM scratch) instead of a constant-index full-weight spec.

    # ---- Lane-dense batch fold: (batch, in) -> (batch/fold, fold*in) --------
    # Row-major reshape is free (no HBM copy); block-diagonal weights (a few
    # KiB) make each folded sub-row an independent copy of the original MLP.
    fold = 1
    if input_size <= 128 and 128 % input_size == 0:
        fold = 128 // input_size                                  # power of two
    while fold > 1 and (batch % fold != 0 or batch // fold < 8):
        fold //= 2
    rows = batch // fold
    width = fold * input_size

    if fold > 1:
        x2d = x2d.reshape(rows, width)
        eye = jnp.eye(fold, dtype=jnp.float32)
        w12 = jnp.kron(eye, w12)                                  # (width, fold*16)
        w3 = jnp.kron(eye, w3)                                    # (fold*16, fold*nc)
        b12 = jnp.tile(b12, (1, fold))
        b3 = jnp.tile(b3, (1, fold))
    hidden = w12.shape[1]
    out_width = fold * n_classes

    # ---- Batch tiling: big tiles, >=~4 grid steps when possible, no padding --
    row_bytes = _round_up(width, 128) * 4          # lane-padded VMEM footprint/row
    tb_budget = max(8, (x_buffer_bytes // row_bytes) // 8 * 8)   # ~8 MiB / buffer
    tb_grid = max(8, _round_up(pl.cdiv(rows, 4), 8))  # keep grid>=~4 (v7x megacore)
    if rows <= 8:
        tb = rows                                   # block == full array, 1 step
    else:
        tb = min(tb_budget, tb_grid)
    grid = (pl.cdiv(rows, tb),)   # ragged last tile handled by Pallas OOB masking

    cost = pl.CostEstimate(
        flops=int(2 * rows * (width * hidden + hidden * out_width)),
        transcendentals=int(rows * out_width),
        bytes_accessed=int(4 * (rows * width + rows * out_width
                                + w12.size + b12.size + w3.size + b3.size)),
    )

    vmem = pltpu.MemorySpace.VMEM
    out = pl.pallas_call(
        _mlp_kernel,
        out_shape=jax.ShapeDtypeStruct((rows, out_width), jnp.float32),
        grid_spec=pltpu.PrefetchScalarGridSpec(
            num_scalar_prefetch=0,
            grid=grid,
            in_specs=[
                # x: streamed per batch tile (double-buffered by BlockSpec).
                pl.BlockSpec((tb, width), lambda i: (i, 0), memory_space=vmem),
                # weights / biases: constant index maps -> VMEM-resident.
                pl.BlockSpec(w12.shape, lambda i: (0, 0), memory_space=vmem),
                pl.BlockSpec(b12.shape, lambda i: (0, 0), memory_space=vmem),
                pl.BlockSpec(w3.shape, lambda i: (0, 0), memory_space=vmem),
                pl.BlockSpec(b3.shape, lambda i: (0, 0), memory_space=vmem),
            ],
            out_specs=pl.BlockSpec((tb, out_width), lambda i: (i, 0),
                                   memory_space=vmem),
        ),
        compiler_params=pltpu.CompilerParams(
            dimension_semantics=("parallel",),   # megacore-shard batch on v7x
            vmem_limit_bytes=48 * 1024 * 1024,   # headroom; actual use ~17 MiB
        ),
        cost_estimate=cost,
    )(x2d, w12, b12, w3, b3)

    return out.reshape(batch, n_classes)


def init_params(key, input_size, n_classes):
    """Deterministic init mimicking nn.Linear's uniform(-1/sqrt(in), 1/sqrt(in)).
    Weights stored as (in_features, out_features)."""
    def linear(k, fan_in, fan_out):
        kw, kb = jax.random.split(k)
        bound = 1.0 / jnp.sqrt(fan_in)
        w = jax.random.uniform(kw, (fan_in, fan_out), jnp.float32, -bound, bound)
        b = jax.random.uniform(kb, (1, fan_out), jnp.float32, -bound, bound)
        return w, b

    k1, k2, k3 = jax.random.split(key, 3)
    w1, b1 = linear(k1, input_size, 8)
    w2, b2 = linear(k2, 8, 16)
    w3, b3 = linear(k3, 16, n_classes)
    return {"w1": w1, "b1": b1, "w2": w2, "b2": b2, "w3": w3, "b3": b3}


if __name__ == "__main__":
    key = jax.random.PRNGKey(0)
    batch, chans, h, w = 64, 2, 4, 4
    input_size = chans * h * w        # 32 after nn.Flatten()
    n_classes = 4

    k_x, k_p = jax.random.split(key)
    x = jax.random.normal(k_x, (batch, chans, h, w), jnp.float32)
    params = init_params(k_p, input_size, n_classes)
    fused = fuse_params(params)       # one-time layer-1/2 fusion

    out = simple_model_forward(x, fused)
    jax.block_until_ready(out)

    # Plain-JAX reference (unfused, same math as the PyTorch forward).
    x2d = x.reshape(batch, -1)
    ref = x2d @ params["w1"] + params["b1"]
    ref = jnp.maximum(ref @ params["w2"] + params["b2"], 0.0)
    ref = jax.nn.sigmoid(ref @ params["w3"] + params["b3"])

    assert out.shape == (batch, n_classes)
    max_diff = jnp.max(jnp.abs(out - ref))
    # Only remaining difference is the (exact-math) layer-1/2 fusion's f32
    # rounding order; the sigmoid is exact now.
    assert jnp.allclose(out, ref, atol=1e-5, rtol=1e-5), (
        f"mismatch vs reference: max abs diff {max_diff}")

    print("KERNEL_OK")
</pallas_src>

<mosaic_0001>
module attributes {stable_mosaic.version = 11 : i64} {
  func.func @_mlp_kernel(%arg0: i32, %arg1: memref<8x128xf32, #tpu.memory_space<vmem>>, %arg2: memref<128x64xf32, #tpu.memory_space<vmem>>, %arg3: memref<1x64xf32, #tpu.memory_space<vmem>>, %arg4: memref<64x16xf32, #tpu.memory_space<vmem>>, %arg5: memref<1x16xf32, #tpu.memory_space<vmem>>, %arg6: memref<8x16xf32, #tpu.memory_space<vmem>>) attributes {dimension_semantics = [#tpu.dimension_semantics<parallel>], iteration_bounds = array<i64: 2>, scalar_prefetch = 0 : i64, scratch_operands = 0 : i64, tpu.core_type = #tpu.core_type<tc>, window_params = [{transform_indices = @transform_0, window_bounds = array<i64: 8, 128>}, {pipeline_mode = #tpu.pipeline_mode<synchronous>, transform_indices = @transform_1, window_bounds = array<i64: 128, 64>}, {pipeline_mode = #tpu.pipeline_mode<synchronous>, transform_indices = @transform_2, window_bounds = array<i64: 1, 64>}, {pipeline_mode = #tpu.pipeline_mode<synchronous>, transform_indices = @transform_3, window_bounds = array<i64: 64, 16>}, {pipeline_mode = #tpu.pipeline_mode<synchronous>, transform_indices = @transform_4, window_bounds = array<i64: 1, 16>}, {transform_indices = @transform_5, window_bounds = array<i64: 8, 16>}]} {
    %c0 = arith.constant 0 : index
    %c0_0 = arith.constant 0 : index
    %0 = vector.load %arg1[%c0, %c0_0] : memref<8x128xf32, #tpu.memory_space<vmem>>, vector<8x128xf32>
    %c0_1 = arith.constant 0 : index
    %c0_2 = arith.constant 0 : index
    %1 = vector.load %arg2[%c0_1, %c0_2] : memref<128x64xf32, #tpu.memory_space<vmem>>, vector<128x64xf32>
    %cst = arith.constant dense<0.000000e+00> : vector<8x64xf32>
    %2 = tpu.matmul %0, %1, %cst {dimension_numbers = #tpu.dot_dimension_numbers<[1], [0], [0], [1], [0, 0, 1, 1], [], []>} : vector<8x128xf32>, vector<128x64xf32>, vector<8x64xf32> -> vector<8x64xf32>
    %c0_3 = arith.constant 0 : index
    %c0_4 = arith.constant 0 : index
    %3 = vector.load %arg3[%c0_3, %c0_4] : memref<1x64xf32, #tpu.memory_space<vmem>>, vector<1x64xf32>
    %4 = vector.broadcast %3 : vector<1x64xf32> to vector<8x64xf32>
    %5 = arith.addf %2, %4 : vector<8x64xf32>
    %cst_5 = arith.constant 0.000000e+00 : f32
    %6 = vector.broadcast %cst_5 : f32 to vector<8x64xf32>
    %7 = arith.maximumf %5, %6 : vector<8x64xf32>
    %c0_6 = arith.constant 0 : index
    %c0_7 = arith.constant 0 : index
    %8 = vector.load %arg4[%c0_6, %c0_7] : memref<64x16xf32, #tpu.memory_space<vmem>>, vector<64x16xf32>
    %cst_8 = arith.constant dense<0.000000e+00> : vector<8x16xf32>
    %9 = tpu.matmul %7, %8, %cst_8 {dimension_numbers = #tpu.dot_dimension_numbers<[1], [0], [0], [1], [0, 0, 1, 1], [], []>} : vector<8x64xf32>, vector<64x16xf32>, vector<8x16xf32> -> vector<8x16xf32>
    %c0_9 = arith.constant 0 : index
    %c0_10 = arith.constant 0 : index
    %10 = vector.load %arg5[%c0_9, %c0_10] : memref<1x16xf32, #tpu.memory_space<vmem>>, vector<1x16xf32>
    %11 = vector.broadcast %10 : vector<1x16xf32> to vector<8x16xf32>
    %12 = arith.addf %9, %11 : vector<8x16xf32>
    %cst_11 = arith.constant 0.000000e+00 : f32
    %13 = vector.broadcast %cst_11 : f32 to vector<8x16xf32>
    %14 = arith.subf %13, %12 : vector<8x16xf32>
    %15 = math.exp %14 : vector<8x16xf32>
    %cst_12 = arith.constant 1.000000e+00 : f32
    %16 = vector.broadcast %cst_12 : f32 to vector<8x16xf32>
    %17 = arith.addf %16, %15 : vector<8x16xf32>
    %cst_13 = arith.constant 1.000000e+00 : f32
    %18 = vector.broadcast %cst_13 : f32 to vector<8x16xf32>
    %19 = arith.divf %18, %17 : vector<8x16xf32>
    %c0_14 = arith.constant 0 : index
    %c0_15 = arith.constant 0 : index
    %20 = vector.load %arg6[%c0_14, %c0_15] : memref<8x16xf32, #tpu.memory_space<vmem>>, vector<8x16xf32>
    tpu.vector_store %arg6[%c0_14, %c0_15], %19 {strides = array<i32>} : memref<8x16xf32, #tpu.memory_space<vmem>>, vector<8x16xf32>,
    return
  }
  func.func @transform_0(%arg0: i32) -> (i32, i32) {
    %c0_i32 = arith.constant 0 : i32
    %c0_i32_0 = arith.constant 0 : i32
    return %arg0, %c0_i32 : i32, i32
  }
  func.func @transform_1(%arg0: i32) -> (i32, i32) {
    %c0_i32 = arith.constant 0 : i32
    %c0_i32_0 = arith.constant 0 : i32
    %c0_i32_1 = arith.constant 0 : i32
    return %c0_i32, %c0_i32_0 : i32, i32
  }
  func.func @transform_2(%arg0: i32) -> (i32, i32) {
    %c0_i32 = arith.constant 0 : i32
    %c0_i32_0 = arith.constant 0 : i32
    %c0_i32_1 = arith.constant 0 : i32
    return %c0_i32, %c0_i32_0 : i32, i32
  }
  func.func @transform_3(%arg0: i32) -> (i32, i32) {
    %c0_i32 = arith.constant 0 : i32
    %c0_i32_0 = arith.constant 0 : i32
    %c0_i32_1 = arith.constant 0 : i32
    return %c0_i32, %c0_i32_0 : i32, i32
  }
  func.func @transform_4(%arg0: i32) -> (i32, i32) {
    %c0_i32 = arith.constant 0 : i32
    %c0_i32_0 = arith.constant 0 : i32
    %c0_i32_1 = arith.constant 0 : i32
    return %c0_i32, %c0_i32_0 : i32, i32
  }
  func.func @transform_5(%arg0: i32) -> (i32, i32) {
    %c0_i32 = arith.constant 0 : i32
    %c0_i32_0 = arith.constant 0 : i32
    return %arg0, %c0_i32 : i32, i32
  }
}

</mosaic_0001>

<llo_original>
// kernel: tpu_custom_call.1
$region0: #{tpu_custom_call.1}
  #allocation0 [shape = 'u32[]', space=smem, size = 0x4, offset = 0x4, fixed_abs, tag = 'smem constant byte address 0x4 - core index']
  #allocation1 [shape = 'u32[72,128]{1,0:T(1,128)}', space=vmem, size = 0x9000, scoped, tag = 'internal scratch']
  %s0 = inlined_call_operand.vmem [shape: f32[16,128], index: 0, kind: input, shape index: {}]
  %s1 = inlined_call_operand.vmem [shape: f32[128,64], index: 1, kind: input, shape index: {}]
  %s2 = inlined_call_operand.vmem [shape: f32[1,64], index: 2, kind: input, shape index: {}]
  %s3 = inlined_call_operand.vmem [shape: f32[64,16], index: 3, kind: input, shape index: {}]
  %s4 = inlined_call_operand.vmem [shape: f32[1,16], index: 4, kind: input, shape index: {}]
  %s5 = inlined_call_operand.hbm [shape: f32[16,16], index: 5, kind: output, shape index: {}]
  %s6 = sld [smem:[#allocation0]]
  $region53: #{tpu_custom_call.1} parent=0
    _
  %s8 = ssub.s32 1, %s6
  %s9 = scalar_select 0, %s8, %s6
  $region1: #{tpu_custom_call.1} parent=0
    #allocation2 [shape = 'u8[8192]{0}', space=vmem, size = 0x2000, scoped, tag = 'output window, operand 0']
    #allocation3 [shape = 's32[2]{0}', space=sflag, size = 0x8, scoped, tag = 'scoped memory for tpu_custom_call.1']
    %10 = vsyncpa [#allocation3], 0
    %s11 = scalar_lea.sflag [#allocation3], 1
    %12 = vsyncpa %s11, 0
    loop: start=0, step=1, limit=4
    $region2: #{tpu_custom_call.1} parent=1 // loop_pre_header
      _
    $region3: #{tpu_custom_call.1} parent=1 // loop_header
      %s14 = sphi 0, %s18
      %p15 = scmp.ge.s32.totalorder %s14, 4
      %s24 = sphi 0, %s26
      %s27 = sphi 0, %s24
      %s28 = sphi 0, %s27
      %s44 = sphi 0, %s28
      %s48 = sphi 0, %s48
      %s50 = sphi 0, %s48
      %s51 = sphi 0, %s50
      %s65 = sphi 0, %s51
      %s69 = sphi 0, %s69
      %s71 = sphi 0, %s69
      %s72 = sphi 0, %s71
      %s86 = sphi 0, %s72
      %s90 = sphi 0, %s90
      %s92 = sphi 0, %s90
      %s93 = sphi 0, %s92
      %s107 = sphi 0, %s93
      %s111 = sphi 0, %s111
      %s113 = sphi 0, %s111
      %s114 = sphi 0, %s113
      %s128 = sphi 0, %s114
      %s134 = sphi 0, %s136
      %s137 = sphi 0, %s134
      %s138 = sphi 0, %s137
      %s154 = sphi 0, %s138
    $region4: #{tpu_custom_call.1} parent=1 // loop_header_branch
      %17 = sbr.rel (%p15) target = $region8
    $region5: #{tpu_custom_call.1} parent=1 // loop_body
      %s19 = ssub.s32 %s14, 1
      %s20 = ssub.s32 %s14, 2
      %s21 = sadd.s32 %s14, 1
      %s22 = ssub.s32 %s14, %s21
      %p23 = scmp.eq.s32.totalorder %s22, 0
      %s25 = sadd.s32 %s24, 1
      %s26 = scalar_select %p23, %s24, %s25
      %p29 = pneg %p23
      %p30 = scmp.eq.s32.totalorder %s14, 1
      %p31 = por %p29, %p30
      %p32 = scmp.ne.s32.totalorder %s24, %s27
      %p33 = scmp.eq.s32.totalorder %s14, 0
      %p34 = por %p32, %p33
      %p35 = scmp.ne.s32.totalorder %s24, %s27
      %p36 = scmp.eq.s32.totalorder %s19, 1
      %p37 = por %p35, %p36
      %p38 = scmp.ne.s32.totalorder %s27, %s28
      %p39 = scmp.eq.s32.totalorder %s19, 0
      %p40 = por %p38, %p39
      %p41 = scmp.ne.s32.totalorder %s27, %s28
      %p42 = scmp.eq.s32.totalorder %s20, 1
      %p43 = por %p41, %p42
      %p45 = scmp.ne.s32.totalorder %s28, %s44
      %p46 = scmp.eq.s32.totalorder %s20, 0
      %p47 = por %p45, %p46
      %s49 = sadd.s32 %s48, 1
      %p52 = scmp.eq.s32.totalorder %s14, 1
      %p53 = scmp.ne.s32.totalorder %s48, %s50
      %p54 = scmp.eq.s32.totalorder %s14, 0
      %p55 = por %p53, %p54
      %p56 = scmp.ne.s32.totalorder %s48, %s50
      %p57 = scmp.eq.s32.totalorder %s19, 1
      %p58 = por %p56, %p57
      %p59 = scmp.ne.s32.totalorder %s50, %s51
      %p60 = scmp.eq.s32.totalorder %s19, 0
      %p61 = por %p59, %p60
      %p62 = scmp.ne.s32.totalorder %s50, %s51
      %p63 = scmp.eq.s32.totalorder %s20, 1
      %p64 = por %p62, %p63
      %p66 = scmp.ne.s32.totalorder %s51, %s65
      %p67 = scmp.eq.s32.totalorder %s20, 0
      %p68 = por %p66, %p67
      %s70 = sadd.s32 %s69, 1
      %p73 = scmp.eq.s32.totalorder %s14, 1
      %p74 = scmp.ne.s32.totalorder %s69, %s71
      %p75 = scmp.eq.s32.totalorder %s14, 0
      %p76 = por %p74, %p75
      %p77 = scmp.ne.s32.totalorder %s69, %s71
      %p78 = scmp.eq.s32.totalorder %s19, 1
      %p79 = por %p77, %p78
      %p80 = scmp.ne.s32.totalorder %s71, %s72
      %p81 = scmp.eq.s32.totalorder %s19, 0
      %p82 = por %p80, %p81
      %p83 = scmp.ne.s32.totalorder %s71, %s72
      %p84 = scmp.eq.s32.totalorder %s20, 1
      %p85 = por %p83, %p84
      %p87 = scmp.ne.s32.totalorder %s72, %s86
      %p88 = scmp.eq.s32.totalorder %s20, 0
      %p89 = por %p87, %p88
      %s91 = sadd.s32 %s90, 1
      %p94 = scmp.eq.s32.totalorder %s14, 1
      %p95 = scmp.ne.s32.totalorder %s90, %s92
      %p96 = scmp.eq.s32.totalorder %s14, 0
      %p97 = por %p95, %p96
      %p98 = scmp.ne.s32.totalorder %s90, %s92
      %p99 = scmp.eq.s32.totalorder %s19, 1
      %p100 = por %p98, %p99
      %p101 = scmp.ne.s32.totalorder %s92, %s93
      %p102 = scmp.eq.s32.totalorder %s19, 0
      %p103 = por %p101, %p102
      %p104 = scmp.ne.s32.totalorder %s92, %s93
      %p105 = scmp.eq.s32.totalorder %s20, 1
      %p106 = por %p104, %p105
      %p108 = scmp.ne.s32.totalorder %s93, %s107
      %p109 = scmp.eq.s32.totalorder %s20, 0
      %p110 = por %p108, %p109
      %s112 = sadd.s32 %s111, 1
      %p115 = scmp.eq.s32.totalorder %s14, 1
      %p116 = scmp.ne.s32.totalorder %s111, %s113
      %p117 = scmp.eq.s32.totalorder %s14, 0
      %p118 = por %p116, %p117
      %p119 = scmp.ne.s32.totalorder %s111, %s113
      %p120 = scmp.eq.s32.totalorder %s19, 1
      %p121 = por %p119, %p120
      %p122 = scmp.ne.s32.totalorder %s113, %s114
      %p123 = scmp.eq.s32.totalorder %s19, 0
      %p124 = por %p122, %p123
      %p125 = scmp.ne.s32.totalorder %s113, %s114
      %p126 = scmp.eq.s32.totalorder %s20, 1
      %p127 = por %p125, %p126
      %p129 = scmp.ne.s32.totalorder %s114, %s128
      %p130 = scmp.eq.s32.totalorder %s20, 0
      %p131 = por %p129, %p130
      %s132 = ssub.s32 %s14, %s21
      %p133 = scmp.eq.s32.totalorder %s132, 0
      %s135 = sadd.s32 %s134, 1
      %s136 = scalar_select %p133, %s134, %s135
      %p139 = pneg %p133
      %p140 = scmp.eq.s32.totalorder %s14, 1
      %p141 = por %p139, %p140
      %p142 = scmp.ne.s32.totalorder %s134, %s137
      %p143 = scmp.eq.s32.totalorder %s14, 0
      %p144 = por %p142, %p143
      %p145 = scmp.ne.s32.totalorder %s134, %s137
      %p146 = scmp.eq.s32.totalorder %s19, 1
      %p147 = por %p145, %p146
      %p148 = scmp.ne.s32.totalorder %s137, %s138
      %p149 = scmp.eq.s32.totalorder %s19, 0
      %p150 = por %p148, %p149
      %p151 = scmp.ne.s32.totalorder %s137, %s138
      %p152 = scmp.eq.s32.totalorder %s20, 1
      %p153 = por %p151, %p152
      %p155 = scmp.ne.s32.totalorder %s138, %s154
      %p156 = scmp.eq.s32.totalorder %s20, 0
      %p157 = por %p155, %p156
      %p158 = scmp.le.s32.totalorder 1, %s14
      %p159 = scmp.lt.s32.totalorder %s14, 3
      %p160 = pnand %p158, %p159
      %p161 = pneg %p160
      // Predicated region
      $region9: #{tpu_custom_call.1} parent=5 // pred_check
        _
      $region10: #{tpu_custom_call.1} parent=5 // pred_check_branch
        %163 = sbr.rel (%p160) target = $region12
      $region11: #{tpu_custom_call.1} parent=5 // pred_region
        %s164 = ssub.s32 %s14, 1
        // Predicated region
        $region13: #{tpu_custom_call.1} parent=11 // pred_check
          %p165 = pneg %p61
        $region14: #{tpu_custom_call.1} parent=11 // pred_check_branch
          %167 = sbr.rel (%p165) target = $region16
        $region15: #{tpu_custom_call.1} parent=11 // pred_region
          _
        $region16: #{tpu_custom_call.1} parent=11 // pred_fallthru
          _
        // Predicated region
        $region17: #{tpu_custom_call.1} parent=11 // pred_check
          %p168 = pneg %p82
        $region18: #{tpu_custom_call.1} parent=11 // pred_check_branch
          %170 = sbr.rel (%p168) target = $region20
        $region19: #{tpu_custom_call.1} parent=11 // pred_region
          _
        $region20: #{tpu_custom_call.1} parent=11 // pred_fallthru
          _
        // Predicated region
        $region21: #{tpu_custom_call.1} parent=11 // pred_check
          %p171 = pneg %p103
        $region22: #{tpu_custom_call.1} parent=11 // pred_check_branch
          %173 = sbr.rel (%p171) target = $region24
        $region23: #{tpu_custom_call.1} parent=11 // pred_region
          _
        $region24: #{tpu_custom_call.1} parent=11 // pred_fallthru
          _
        // Predicated region
        $region25: #{tpu_custom_call.1} parent=11 // pred_check
          %p174 = pneg %p124
        $region26: #{tpu_custom_call.1} parent=11 // pred_check_branch
          %176 = sbr.rel (%p174) target = $region28
        $region27: #{tpu_custom_call.1} parent=11 // pred_region
          _
        $region28: #{tpu_custom_call.1} parent=11 // pred_fallthru
          _
      $region12: #{tpu_custom_call.1} parent=5 // pred_fallthru
        _
      %p177 = scmp.lt.s32.totalorder %s14, 2
      // Predicated region
      $region29: #{tpu_custom_call.1} parent=5 // pred_check
        %p178 = pneg %p177
      $region30: #{tpu_custom_call.1} parent=5 // pred_check_branch
        %180 = sbr.rel (%p178) target = $region32
      $region31: #{tpu_custom_call.1} parent=5 // pred_region
        // Predicated region
        $region33: #{tpu_custom_call.1} parent=31 // pred_check
          %p181 = pneg %p34
        $region34: #{tpu_custom_call.1} parent=31 // pred_check_branch
          %183 = sbr.rel (%p181) target = $region36
        $region35: #{tpu_custom_call.1} parent=31 // pred_region
          %p184 = scmp.lt.s32.totalorder %s14, 1
          %s185 = scalar_select %p184, %s14, 1
          %s186 = smul.addr %s185, 8
          %s187 = scalar_lea.vmem %s0, %s186
        $region36: #{tpu_custom_call.1} parent=31 // pred_fallthru
          _
      $region32: #{tpu_custom_call.1} parent=5 // pred_fallthru
        _
      %p188 = scmp.le.s32.totalorder 1, %s14
      %p189 = scmp.lt.s32.totalorder %s14, 3
      %p190 = pnand %p188, %p189
      %p191 = pneg %p190
      // Predicated region
      $region37: #{tpu_custom_call.1} parent=5 // pred_check
        _
      $region38: #{tpu_custom_call.1} parent=5 // pred_check_branch
        %193 = sbr.rel (%p190) target = $region40
      $region39: #{tpu_custom_call.1} parent=5 // pred_region
        %s194 = ssub.s32 %s14, 1
        %p195 = scmp.lt.s32.totalorder %s19, 1
        %s196 = scalar_select %p195, %s19, 1
        %s197 = smul.addr %s196, 8
        %s198 = scalar_lea.vmem %s0, %s197
        %p199 = pneg %p40
        %p200 = pneg %p37
        %p201 = pneg %p61
        %p202 = pneg %p58
        %p203 = pneg %p82
        %p204 = pneg %p79
        %p205 = pneg %p103
        %p206 = pneg %p100
        %p207 = pneg %p124
        %p208 = pneg %p121
        %p209 = pneg %p150
        %p210 = pneg %p147
        %s211 = sand.u32 %s137, 1
        %s212 = scalar_lea.sflag [#allocation3], %s211
        %s213 = sand.u32 %s137, 1
        %s214 = smul.addr %s213, 8
        %s215 = scalar_lea.vmem [#allocation2], %s214
        %p216 = scmp.lt.s32.totalorder %s19, 1
        %s217 = scalar_select %p216, %s19, 1
        %s218 = smul.addr %s217, 8
        %s219 = scalar_lea.vmem %s0, %s218
        %v220 = vld [vmem:[%s219] sm:$0xff]
        %v221 = vld [vmem:[%s1] sm:$0xff]
        %v222 = vld [vmem:[%s1 + $0x8] sm:$0xff]
        %v223 = vld [vmem:[%s1 + $0x10] sm:$0xff]
        %v224 = vld [vmem:[%s1 + $0x18] sm:$0xff]
        %v225 = vld [vmem:[%s1 + $0x20] sm:$0xff]
        %v226 = vld [vmem:[%s1 + $0x28] sm:$0xff]
        %v227 = vld [vmem:[%s1 + $0x30] sm:$0xff]
        %v228 = vld [vmem:[%s1 + $0x38] sm:$0xff]
        %v229 = vld [vmem:[%s1 + $0x40] sm:$0xff]
        %v230 = vld [vmem:[%s1 + $0x48] sm:$0xff]
        %v231 = vld [vmem:[%s1 + $0x50] sm:$0xff]
        %v232 = vld [vmem:[%s1 + $0x58] sm:$0xff]
        %v233 = vld [vmem:[%s1 + $0x60] sm:$0xff]
        %v234 = vld [vmem:[%s1 + $0x68] sm:$0xff]
        %v235 = vld [vmem:[%s1 + $0x70] sm:$0xff]
        %v236 = vld [vmem:[%s1 + $0x78] sm:$0xff]
        %v237 = vld [vmem:[%s2] sm:$0x1]
        %v239 = vperm.slane %v237, 0
        %241 = vmatpush.msra.mxu0 %v236
        %242 = vmatpush.msra.mxu0 %v235
        %243 = vmatpush.msra.mxu0 %v234
        %244 = vmatpush.msra.mxu0 %v233
        %245 = vmatpush.msra.mxu0 %v232
        %246 = vmatpush.msra.mxu0 %v231
        %247 = vmatpush.msra.mxu0 %v230
        %248 = vmatpush.msra.mxu0 %v229
        %249 = vmatpush.msra.mxu0 %v228
        %250 = vmatpush.msra.mxu0 %v227
        %251 = vmatpush.msra.mxu0 %v226
        %252 = vmatpush.msra.mxu0 %v225
        %253 = vmatpush.msra.mxu0 %v224
        %254 = vmatpush.msra.mxu0 %v223
        %255 = vmatpush.msra.mxu0 %v222
        %256 = vmatpush.msra.mxu0 %v221
        %257 = vmatmul.f32.gmra.mxu0 %v220
        %v258 = vpop.f32.mrf.mxu0
        %v259 = vadd.f32 %v239, %v258
        %260 = vdwg.mxu0
        %v261 = vmax.f32 %v259, 0.0
        %v262 = vld [vmem:[%s3] sm:$0xff]
        %v263 = vld [vmem:[%s3 + $0x8] sm:$0xff]
        %v264 = vld [vmem:[%s3 + $0x10] sm:$0xff]
        %v265 = vld [vmem:[%s3 + $0x18] sm:$0xff]
        %v266 = vld [vmem:[%s3 + $0x20] sm:$0xff]
        %v267 = vld [vmem:[%s3 + $0x28] sm:$0xff]
        %v268 = vld [vmem:[%s3 + $0x30] sm:$0xff]
        %v269 = vld [vmem:[%s3 + $0x38] sm:$0xff]
        %v270 = vld [vmem:[%s4] sm:$0x1]
        %v272 = vperm.slane %v270, 0
        %vm274 = vcmask 523264
        %v276 = vsel %vm274, %v261, 0
        %278 = vmatpush.msra.mxu0 0.0
        %279 = vmatpush.msra.mxu0 0.0
        %280 = vmatpush.msra.mxu0 0.0
        %281 = vmatpush.msra.mxu0 0.0
        %282 = vmatpush.msra.mxu0 0.0
        %283 = vmatpush.msra.mxu0 0.0
        %284 = vmatpush.msra.mxu0 0.0
        %285 = vmatpush.msra.mxu0 0.0
        %286 = vmatpush.msra.mxu0 %v269
        %287 = vmatpush.msra.mxu0 %v268
        %288 = vmatpush.msra.mxu0 %v267
        %289 = vmatpush.msra.mxu0 %v266
        %290 = vmatpush.msra.mxu0 %v265
        %291 = vmatpush.msra.mxu0 %v264
        %292 = vmatpush.msra.mxu0 %v263
        %293 = vmatpush.msra.mxu0 %v262
        %294 = vmatmul.f32.gmra.mxu0 %v276
        %v295 = vpop.f32.mrf.mxu0
        %v296 = vadd.f32 %v272, %v295
        %297 = vdwg.mxu0
        %v298 = vsub.f32 0.0, %v296
        %v299 = vmul.f32 %v298, 1.442695
        %v300 = vpow.pop %v299
        %v301 = vadd.f32 %v300, 1.0
        %v302 = vrcp.pop %v301
        %v303 = vmul.f32 %v301, %v302
        %v304 = vsub.f32 1.0, %v303
        %v305 = vmul.f32 %v302, %v304
        %v306 = vadd.f32 %v302, %v305
        %vm307 = vweird.f32 %v301
        %vm308 = vweird.f32 %v302
        %vm309 = vmor %vm307, %vm308
        %v310 = vsel %vm309, %v302, %v306
        %v311 = vand.u32 2147483647, %v301
        %vm312 = vcmp.eq.f32.partialorder %v311, 8.507059e+37
        %v313 = vand.u32 %v301, 2147483648
        %v314 = vor.u32 1.1754944e-38, %v313
        %v315 = vsel %vm312, %v314, %v310
        %v316 = vmul.f32 1.0, %v315
        %vm317 = vcmask 130048
        %318 = vst.msk [vmem:[%s215] sm:$0xff] %vm317, %v316
        %s319 = sand.u32 %s137, 1
        %s320 = scalar_lea.sflag [#allocation3], %s319
        %s321 = sand.u32 %s137, 1
        %s322 = smul.addr %s321, 8
        %s323 = scalar_lea.vmem [#allocation2], %s322
        // Predicated region
        $region41: #{tpu_custom_call.1} parent=39 // pred_check
          %p324 = pneg %p147
        $region42: #{tpu_custom_call.1} parent=39 // pred_check_branch
          %326 = sbr.rel (%p324) target = $region44
        $region43: #{tpu_custom_call.1} parent=39 // pred_region
          %328 = vsyncadd %s320, 0
          %s329 = smul.addr %s19, 8
          %s330 = scalar_lea.hbm %s5, %s329
          %s332 = sshll.u32 %s323, 4
          %s333 = int_to_ptr.vmem [resolvable:$true] %s332
          %s334 = sshll.u32 %s330, 4
          %s335 = int_to_ptr.hbm [resolvable:$true] %s334
          %337 = dma.vmem_to_hbm [thread:$0]  %s333, 128, %s335, %s320
        $region44: #{tpu_custom_call.1} parent=39 // pred_fallthru
          _
      $region40: #{tpu_custom_call.1} parent=5 // pred_fallthru
        _
      %p338 = scmp.le.s32.totalorder 2, %s14
      // Predicated region
      $region45: #{tpu_custom_call.1} parent=5 // pred_check
        %p339 = pneg %p338
      $region46: #{tpu_custom_call.1} parent=5 // pred_check_branch
        %341 = sbr.rel (%p339) target = $region48
      $region47: #{tpu_custom_call.1} parent=5 // pred_region
        %s342 = ssub.s32 %s14, 2
        // Predicated region
        $region49: #{tpu_custom_call.1} parent=47 // pred_check
          %p343 = pneg %p153
        $region50: #{tpu_custom_call.1} parent=47 // pred_check_branch
          %345 = sbr.rel (%p343) target = $region52
        $region51: #{tpu_custom_call.1} parent=47 // pred_region
          %s346 = sand.u32 %s138, 1
          %s347 = scalar_lea.sflag [#allocation3], %s346
          %s348 = sand.u32 %s138, 1
          %s349 = smul.addr %s348, 8
          %s350 = scalar_lea.vmem [#allocation2], %s349
          %352 = dma.done %s347, 128
        $region52: #{tpu_custom_call.1} parent=47 // pred_fallthru
          _
      $region48: #{tpu_custom_call.1} parent=5 // pred_fallthru
        _
    $region6: #{tpu_custom_call.1} parent=1 // loop_footer
      %s18 = sadd.s32 1, %s14
    $region7: #{tpu_custom_call.1} parent=1 // loop_footer_branch
      %13 = sbr.rel target = $region3
    $region8: #{tpu_custom_call.1} parent=1 // loop_exit
      _
    %353 = vsyncpa [#allocation3], 1
    %s354 = scalar_lea.sflag [#allocation3], 1
    %355 = vsyncpa %s354, 1

</llo_original>
